<compile_context>
chip_gen: v7x
topology: tpu7x:2x2x1
jax: 0.10.0
libtpu: 0.0.40
codegen_flags: <defaults>
</compile_context>

<pallas_src>
import functools

import jax
import jax.numpy as jnp
from jax.experimental import pallas as pl
from jax.experimental.pallas import tpu as pltpu


def cross_attention_kernel(q_ref, k_ref, v_ref, mask_ref,
                           wq_ref, bq_ref, wo_ref,
                           out_ref, q_sc, ctx_sc, out_sc,
                           *, compute_dtype):
    """Grid = (batch, q_tile, head, k_tile); head/k_tile are reduction axes."""
    h = pl.program_id(2)
    kt = pl.program_id(3)
    last_h = pl.num_programs(2) - 1
    last_kt = pl.num_programs(3) - 1
    cdt = compute_dtype

    # Zero the per-(b, t) output accumulator at the start of the head loop.
    @pl.when((h == 0) & (kt == 0))
    def _():
        out_sc[...] = jnp.zeros_like(out_sc)

    # Per-head query projection, once per head (kt == 0), cached in VMEM.
    # The 1/sqrt(D) scale is pre-folded into Wq^T / bq on the host.
    @pl.when(kt == 0)
    def _():
        q_h = jnp.dot(q_ref[0], wq_ref[0],
                      preferred_element_type=jnp.float32) + bq_ref[0]
        q_sc[...] = q_h.astype(q_sc.dtype)
        ctx_sc[...] = jnp.zeros_like(ctx_sc)

    k_h = k_ref[0, 0]                                   # (TK, D) compute dtype
    v_h = v_ref[0, 0]                                   # (TK, D) compute dtype

    # scores = q_h @ k_h^T, f32 accumulation on the MXU.
    scores = jax.lax.dot_general(
        q_sc[...], k_h, (((1,), (1,)), ((), ())),
        preferred_element_type=jnp.float32)             # (TQ, TK) f32

    # masked_fill(mask == 0, -inf) then elementwise SiLU, fused, in compute dtype.
    # silu(-inf) = NaN exactly as in the PyTorch reference.
    sc = scores.astype(cdt)
    keep = mask_ref[0] != 0                             # (TQ or 1, TK) -> broadcasts
    sc = jnp.where(keep, sc, jnp.asarray(-jnp.inf, dtype=cdt))
    attn = sc * jax.nn.sigmoid(sc)
    # TODO(synk): attn_dropout(p=0.1) / resid_dropout(p=0.1) are identity in eval.

    # Accumulate this key tile's contribution (SiLU is elementwise, so the Sk
    # reduction is exactly accumulable).
    ctx_sc[...] += jnp.dot(attn, v_h, preferred_element_type=jnp.float32)

    # Head h finished: fold it into the output through its Wo^T row block.
    @pl.when(kt == last_kt)
    def _():
        out_sc[...] += jnp.dot(ctx_sc[...].astype(cdt), wo_ref[0],
                               preferred_element_type=jnp.float32)

    @pl.when((h == last_h) & (kt == last_kt))
    def _():
        out_ref[0] = out_sc[...].astype(out_ref.dtype)


def cross_attention(query, key, value, mask, params, *, num_heads,
                    compute_dtype=jnp.bfloat16, q_tile=128, k_tile=512):
    if mask is None:
        # Mirrors `if not mask: return self.output` (self.output = torch.tensor(0)).
        return jnp.array(0, dtype=jnp.int32)

    B, S, H = query.shape
    Sk = key.shape[1]
    D = H // num_heads
    scaling = D ** (-0.5)
    cdt = compute_dtype

    # ---- host-side layout / one-time work (no per-tile recompute) --------------
    # nn.Linear computes x @ W.T + b.  Per-head weight slabs (layout only); the
    # attention scale is folded into Wq^T / bq (same result, not bit-identical
    # op order vs. the reference).
    wq_heads = (params["wq"].T * scaling).reshape(H, num_heads, D)
    wq_heads = jnp.transpose(wq_heads, (1, 0, 2)).astype(cdt)          # (nH, H, D)
    bq_heads = (params["bq"] * scaling).reshape(num_heads, 1, D).astype(jnp.float32)
    wo_heads = params["wo"].T.reshape(num_heads, D, H).astype(cdt)     # (nH, D, H)

    # K/V projections are query-tile-invariant: compute them ONCE here (XLA matmul,
    # compute-dtype operands / f32 accumulation), pre-split to (B, nH, Sk, D).
    def project(x, w, b):
        y = jnp.dot(x.astype(cdt), w.T.astype(cdt),
                    preferred_element_type=jnp.float32) + b
        return y.reshape(B, Sk, num_heads, D).transpose(0, 2, 1, 3).astype(cdt)

    k_heads = project(key, params["wk"], params["bk"])                 # (B,nH,Sk,D)
    v_heads = project(value, params["wv"], params["bv"])               # (B,nH,Sk,D)

    # Normalize the mask to an int8 "keep" array; padding masks stay un-broadcast
    # over the query axis (tq x less HBM traffic / VMEM per step).
    m = jnp.asarray(mask)
    if m.ndim == 2:
        m = m[None, None]
    elif m.ndim == 3:
        m = m[:, None]
    if m.shape[1] != 1:
        # TODO(synk): per-head masks are not supported; standard usage broadcasts.
        m = m[:, :1]
    q_bcast = m.shape[2] == 1
    mq = 1 if q_bcast else S
    keep = (jnp.broadcast_to(m[:, 0], (B, mq, Sk)) != 0).astype(jnp.int8)

    # ---- tiling ----------------------------------------------------------------
    tq = S if S <= q_tile else q_tile
    tk = Sk if Sk <= k_tile else k_tile
    n_qt = pl.cdiv(S, tq)
    n_kt = pl.cdiv(Sk, tk)
    sk_pad = n_kt * tk
    if sk_pad != Sk:
        # Zero K/V rows + keep=1 mask columns: padded key columns give scores=0,
        # silu(0)=0, v=0 -> exactly zero contribution (and no NaN from garbage).
        pad = sk_pad - Sk
        k_heads = jnp.pad(k_heads, ((0, 0), (0, 0), (0, pad), (0, 0)))
        v_heads = jnp.pad(v_heads, ((0, 0), (0, 0), (0, pad), (0, 0)))
        keep = jnp.pad(keep, ((0, 0), (0, 0), (0, pad)), constant_values=1)

    query_c = query.astype(cdt)
    grid = (B, n_qt, num_heads, n_kt)

    if q_bcast:
        mask_spec = pl.BlockSpec((1, 1, tk), lambda b, t, h, kt: (b, 0, kt))
    else:
        mask_spec = pl.BlockSpec((1, tq, tk), lambda b, t, h, kt: (b, t, kt))

    itemsize = jnp.dtype(cdt).itemsize
    flops = 2 * B * S * H * H            # q projection
    flops += 2 * 2 * B * S * sk_pad * H  # scores + attn@v (all heads)
    flops += 2 * B * S * H * H           # output projection
    bytes_accessed = (query_c.size * itemsize
                      + (k_heads.size + v_heads.size) * itemsize
                      + keep.size
                      + (wq_heads.size + wo_heads.size) * itemsize
                      + bq_heads.size * 4
                      + B * S * H * jnp.dtype(query.dtype).itemsize)
    cost = pl.CostEstimate(flops=flops,
                           transcendentals=B * num_heads * S * sk_pad,
                           bytes_accessed=bytes_accessed)

    kernel = functools.partial(cross_attention_kernel, compute_dtype=cdt)

    return pl.pallas_call(
        kernel,
        out_shape=jax.ShapeDtypeStruct((B, S, H), query.dtype),
        grid=grid,
        in_specs=[
            pl.BlockSpec((1, tq, H), lambda b, t, h, kt: (b, t, 0)),        # query
            pl.BlockSpec((1, 1, tk, D), lambda b, t, h, kt: (b, h, kt, 0)),  # K head
            pl.BlockSpec((1, 1, tk, D), lambda b, t, h, kt: (b, h, kt, 0)),  # V head
            mask_spec,                                                       # keep
            pl.BlockSpec((1, H, D), lambda b, t, h, kt: (h, 0, 0)),          # Wq^T_h
            pl.BlockSpec((1, 1, D), lambda b, t, h, kt: (h, 0, 0)),          # bq_h
            pl.BlockSpec((1, D, H), lambda b, t, h, kt: (h, 0, 0)),          # Wo^T_h
        ],
        out_specs=pl.BlockSpec((1, tq, H), lambda b, t, h, kt: (b, t, 0)),
        scratch_shapes=[
            pltpu.VMEM((tq, D), cdt),           # projected q tile for current head
            pltpu.VMEM((tq, D), jnp.float32),   # ctx accumulator over key tiles
            pltpu.VMEM((tq, H), jnp.float32),   # output accumulator over heads
        ],
        compiler_params=pltpu.CompilerParams(
            dimension_semantics=("parallel", "parallel", "arbitrary", "arbitrary"),
            vmem_limit_bytes=48 * 1024 * 1024),
        cost_estimate=cost,
    )(query_c, k_heads, v_heads, keep, wq_heads, bq_heads, wo_heads)


def reference_jax(query, key, value, mask, params, *, num_heads):
    """Pure-JAX f32 mirror of the PyTorch forward (eval mode) for verification."""
    B, S, H = query.shape
    D = H // num_heads
    q = query @ params["wq"].T + params["bq"]
    k = key @ params["wk"].T + params["bk"]
    v = value @ params["wv"].T + params["bv"]
    q = q.reshape(B, -1, num_heads, D).transpose(0, 2, 1, 3)
    k = k.reshape(B, -1, num_heads, D).transpose(0, 2, 1, 3)
    v = v.reshape(B, -1, num_heads, D).transpose(0, 2, 1, 3)
    scores = jnp.einsum('bhqd,bhkd->bhqk', q, k) * (D ** -0.5)
    scores = jnp.where(mask == 0, -jnp.inf, scores)
    attn = scores * jax.nn.sigmoid(scores)              # F.silu
    out = jnp.einsum('bhqk,bhkd->bhqd', attn, v)
    out = out.transpose(0, 2, 1, 3).reshape(B, S, H)
    return out @ params["wo"].T


def _make_params(key0, hidden, scale=0.1):
    ks = jax.random.split(key0, 7)
    init = lambda k, shape: (scale * jax.random.normal(k, shape)).astype(jnp.float32)
    return {
        "wq": init(ks[0], (hidden, hidden)), "bq": init(ks[1], (hidden,)),
        "wk": init(ks[2], (hidden, hidden)), "bk": init(ks[3], (hidden,)),
        "wv": init(ks[4], (hidden, hidden)), "bv": init(ks[5], (hidden,)),
        "wo": init(ks[6], (hidden, hidden)),   # no bias, as in the module
    }


if __name__ == "__main__":
    root = jax.random.PRNGKey(0)

    # ---- small test, matching the module's natural shapes ----------------------
    batch, seq, hidden, num_heads = 2, 8, 32, 4
    kp, kq, kk, kv, kbig = jax.random.split(root, 5)
    params = _make_params(kp, hidden)
    query = jax.random.normal(kq, (batch, seq, hidden), dtype=jnp.float32)
    key_in = jax.random.normal(kk, (batch, seq, hidden), dtype=jnp.float32)
    value = jax.random.normal(kv, (batch, seq, hidden), dtype=jnp.float32)
    # All-ones mask: any zero entry would give -inf -> NaN through SiLU (faithful
    # to the reference, but useless for a numeric comparison).
    mask = jnp.ones((batch, 1, seq, seq), dtype=jnp.float32)

    ref = reference_jax(query, key_in, value, mask, params, num_heads=num_heads)

    # mask=None path (mirrors `if not mask: return self.output`).
    none_out = cross_attention(query, key_in, value, None, params, num_heads=num_heads)
    assert int(none_out) == 0

    # f32 compute path (v5e-friendly; keeps elementwise math in f32).
    out_f32 = jax.block_until_ready(
        cross_attention(query, key_in, value, mask, params,
                        num_heads=num_heads, compute_dtype=jnp.float32))
    assert out_f32.shape == (batch, seq, hidden)
    assert jnp.allclose(out_f32, ref, atol=1e-2, rtol=1e-2), "f32 kernel mismatch"

    # Default fast path: bf16 MXU operands / bf16 elementwise, f32 accumulation.
    out_bf16 = jax.block_until_ready(
        cross_attention(query, key_in, value, mask, params, num_heads=num_heads))
    assert out_bf16.shape == (batch, seq, hidden)
    assert jnp.allclose(out_bf16, ref, atol=1e-1, rtol=1e-1), "bf16 kernel mismatch"

    # ---- moderate test exercising multi-tile q, ragged Sk tiles, padding mask --
    B2, S2, Sk2, H2, nH2 = 2, 256, 320, 256, 4
    kp2, kq2, kk2, kv2 = jax.random.split(kbig, 4)
    params2 = _make_params(kp2, H2)
    q2 = jax.random.normal(kq2, (B2, S2, H2), dtype=jnp.float32)
    k2 = jax.random.normal(kk2, (B2, Sk2, H2), dtype=jnp.float32)
    v2 = jax.random.normal(kv2, (B2, Sk2, H2), dtype=jnp.float32)
    mask2 = jnp.ones((B2, 1, 1, Sk2), dtype=jnp.float32)   # q-broadcast padding mask

    ref2 = reference_jax(q2, k2, v2, mask2, params2, num_heads=nH2)
    out2 = jax.block_until_ready(
        cross_attention(q2, k2, v2, mask2, params2, num_heads=nH2,
                        q_tile=128, k_tile=128))
    assert out2.shape == (B2, S2, H2)
    rel = jnp.linalg.norm(out2 - ref2) / jnp.linalg.norm(ref2)
    assert float(rel) < 0.1, f"bf16 kernel relative error too large: {float(rel)}"

    print("KERNEL_OK")
</pallas_src>

<mosaic_0001>
module attributes {stable_mosaic.version = 11 : i64} {
  func.func @cross_attention_kernel(%arg0: i32, %arg1: i32, %arg2: i32, %arg3: i32, %arg4: memref<1x8x32xf32, #tpu.memory_space<vmem>>, %arg5: memref<1x1x8x8xf32, #tpu.memory_space<vmem>>, %arg6: memref<1x1x8x8xf32, #tpu.memory_space<vmem>>, %arg7: memref<1x8x8xi8, #tpu.memory_space<vmem>>, %arg8: memref<1x32x8xf32, #tpu.memory_space<vmem>>, %arg9: memref<1x1x8xf32, #tpu.memory_space<vmem>>, %arg10: memref<1x8x32xf32, #tpu.memory_space<vmem>>, %arg11: memref<1x8x32xf32, #tpu.memory_space<vmem>>, %arg12: memref<8x8xf32, #tpu.memory_space<vmem>>, %arg13: memref<8x8xf32, #tpu.memory_space<vmem>>, %arg14: memref<8x32xf32, #tpu.memory_space<vmem>>) attributes {dimension_semantics = [#tpu.dimension_semantics<parallel>, #tpu.dimension_semantics<parallel>, #tpu.dimension_semantics<arbitrary>, #tpu.dimension_semantics<arbitrary>], iteration_bounds = array<i64: 2, 1, 4, 1>, scalar_prefetch = 0 : i64, scratch_operands = 3 : i64, tpu.core_type = #tpu.core_type<tc>, window_params = [{transform_indices = @transform_0, window_bounds = array<i64: 1, 8, 32>}, {transform_indices = @transform_1, window_bounds = array<i64: 1, 1, 8, 8>}, {transform_indices = @transform_2, window_bounds = array<i64: 1, 1, 8, 8>}, {transform_indices = @transform_3, window_bounds = array<i64: 1, 8, 8>}, {transform_indices = @transform_4, window_bounds = array<i64: 1, 32, 8>}, {transform_indices = @transform_5, window_bounds = array<i64: 1, 1, 8>}, {transform_indices = @transform_6, window_bounds = array<i64: 1, 8, 32>}, {transform_indices = @transform_7, window_bounds = array<i64: 1, 8, 32>}]} {
    %c0_i32 = arith.constant 0 : i32
    %0 = arith.cmpi eq, %arg2, %c0_i32 : i32
    %c0_i32_0 = arith.constant 0 : i32
    %1 = arith.cmpi eq, %arg3, %c0_i32_0 : i32
    %2 = arith.andi %0, %1 : i1
    %3 = arith.extui %2 : i1 to i32
    %c0_i32_1 = arith.constant 0 : i32
    %4 = arith.cmpi ne, %3, %c0_i32_1 : i32
    scf.if %4 {
      %cst_27 = arith.constant 0.000000e+00 : f32
      %38 = vector.broadcast %cst_27 : f32 to vector<8x32xf32>
      %c0_28 = arith.constant 0 : index
      %c0_29 = arith.constant 0 : index
      %39 = vector.load %arg14[%c0_28, %c0_29] : memref<8x32xf32, #tpu.memory_space<vmem>>, vector<8x32xf32>
      tpu.vector_store %arg14[%c0_28, %c0_29], %38 {strides = array<i32>} : memref<8x32xf32, #tpu.memory_space<vmem>>, vector<8x32xf32>,
    } else {
    }
    %c0_i32_2 = arith.constant 0 : i32
    %5 = arith.cmpi eq, %arg3, %c0_i32_2 : i32
    %6 = arith.extui %5 : i1 to i32
    %c0_i32_3 = arith.constant 0 : i32
    %7 = arith.cmpi ne, %6, %c0_i32_3 : i32
    scf.if %7 {
      %c0_27 = arith.constant 0 : index
      %c0_28 = arith.constant 0 : index
      %c0_29 = arith.constant 0 : index
      %38 = vector.load %arg4[%c0_27, %c0_28, %c0_29] : memref<1x8x32xf32, #tpu.memory_space<vmem>>, vector<1x8x32xf32>
      %39 = vector.shape_cast %38 : vector<1x8x32xf32> to vector<8x32xf32>
      %c0_30 = arith.constant 0 : index
      %c0_31 = arith.constant 0 : index
      %c0_32 = arith.constant 0 : index
      %40 = vector.load %arg8[%c0_30, %c0_31, %c0_32] : memref<1x32x8xf32, #tpu.memory_space<vmem>>, vector<1x32x8xf32>
      %41 = vector.shape_cast %40 : vector<1x32x8xf32> to vector<32x8xf32>
      %cst_33 = arith.constant dense<0.000000e+00> : vector<8x8xf32>
      %42 = tpu.matmul %39, %41, %cst_33 {dimension_numbers = #tpu.dot_dimension_numbers<[1], [0], [0], [1], [0, 0, 1, 1], [], []>} : vector<8x32xf32>, vector<32x8xf32>, vector<8x8xf32> -> vector<8x8xf32>
      %c0_34 = arith.constant 0 : index
      %c0_35 = arith.constant 0 : index
      %c0_36 = arith.constant 0 : index
      %43 = vector.load %arg9[%c0_34, %c0_35, %c0_36] : memref<1x1x8xf32, #tpu.memory_space<vmem>>, vector<1x1x8xf32>
      %44 = vector.shape_cast %43 : vector<1x1x8xf32> to vector<1x8xf32>
      %45 = vector.broadcast %44 : vector<1x8xf32> to vector<8x8xf32>
      %46 = arith.addf %42, %45 : vector<8x8xf32>
      %c0_37 = arith.constant 0 : index
      %c0_38 = arith.constant 0 : index
      %47 = vector.load %arg12[%c0_37, %c0_38] : memref<8x8xf32, #tpu.memory_space<vmem>>, vector<8x8xf32>
      tpu.vector_store %arg12[%c0_37, %c0_38], %46 {strides = array<i32>} : memref<8x8xf32, #tpu.memory_space<vmem>>, vector<8x8xf32>,
      %cst_39 = arith.constant 0.000000e+00 : f32
      %48 = vector.broadcast %cst_39 : f32 to vector<8x8xf32>
      %c0_40 = arith.constant 0 : index
      %c0_41 = arith.constant 0 : index
      %49 = vector.load %arg13[%c0_40, %c0_41] : memref<8x8xf32, #tpu.memory_space<vmem>>, vector<8x8xf32>
      tpu.vector_store %arg13[%c0_40, %c0_41], %48 {strides = array<i32>} : memref<8x8xf32, #tpu.memory_space<vmem>>, vector<8x8xf32>,
    } else {
    }
    %c0 = arith.constant 0 : index
    %c0_4 = arith.constant 0 : index
    %c0_5 = arith.constant 0 : index
    %c0_6 = arith.constant 0 : index
    %8 = vector.load %arg5[%c0, %c0_4, %c0_5, %c0_6] : memref<1x1x8x8xf32, #tpu.memory_space<vmem>>, vector<1x1x8x8xf32>
    %9 = vector.shape_cast %8 : vector<1x1x8x8xf32> to vector<8x8xf32>
    %c0_7 = arith.constant 0 : index
    %c0_8 = arith.constant 0 : index
    %c0_9 = arith.constant 0 : index
    %c0_10 = arith.constant 0 : index
    %10 = vector.load %arg6[%c0_7, %c0_8, %c0_9, %c0_10] : memref<1x1x8x8xf32, #tpu.memory_space<vmem>>, vector<1x1x8x8xf32>
    %11 = vector.shape_cast %10 : vector<1x1x8x8xf32> to vector<8x8xf32>
    %c0_11 = arith.constant 0 : index
    %c0_12 = arith.constant 0 : index
    %12 = vector.load %arg12[%c0_11, %c0_12] : memref<8x8xf32, #tpu.memory_space<vmem>>, vector<8x8xf32>
    %cst = arith.constant dense<0.000000e+00> : vector<8x8xf32>
    %13 = tpu.matmul %12, %9, %cst {dimension_numbers = #tpu.dot_dimension_numbers<[1], [1], [0], [0], [0, 0, 1, 0], [], []>} : vector<8x8xf32>, vector<8x8xf32>, vector<8x8xf32> -> vector<8x8xf32>
    %c0_13 = arith.constant 0 : index
    %c0_14 = arith.constant 0 : index
    %c0_15 = arith.constant 0 : index
    %14 = vector.load %arg7[%c0_13, %c0_14, %c0_15] : memref<1x8x8xi8, #tpu.memory_space<vmem>>, vector<1x8x8xi8>
    %15 = vector.shape_cast %14 : vector<1x8x8xi8> to vector<8x8xi8>
    %c0_i8 = arith.constant 0 : i8
    %16 = vector.broadcast %c0_i8 : i8 to vector<8x8xi8>
    %17 = arith.cmpi ne, %15, %16 : vector<8x8xi8>
    %cst_16 = arith.constant 0xFF800000 : f32
    %18 = vector.broadcast %cst_16 : f32 to vector<8x8xf32>
    %19 = arith.select %17, %13, %18 : vector<8x8xi1>, vector<8x8xf32>
    %20 = arith.negf %19 : vector<8x8xf32>
    %21 = math.exp %20 : vector<8x8xf32>
    %cst_17 = arith.constant 1.000000e+00 : f32
    %22 = vector.broadcast %cst_17 : f32 to vector<8x8xf32>
    %23 = arith.addf %22, %21 : vector<8x8xf32>
    %24 = arith.divf %22, %23 : vector<8x8xf32>
    %25 = arith.mulf %19, %24 : vector<8x8xf32>
    %c0_18 = arith.constant 0 : index
    %c0_19 = arith.constant 0 : index
    %26 = vector.load %arg13[%c0_18, %c0_19] : memref<8x8xf32, #tpu.memory_space<vmem>>, vector<8x8xf32>
    %cst_20 = arith.constant dense<0.000000e+00> : vector<8x8xf32>
    %27 = tpu.matmul %25, %11, %cst_20 {dimension_numbers = #tpu.dot_dimension_numbers<[1], [0], [0], [1], [0, 0, 1, 1], [], []>} : vector<8x8xf32>, vector<8x8xf32>, vector<8x8xf32> -> vector<8x8xf32>
    %28 = arith.addf %26, %27 : vector<8x8xf32>
    %c0_21 = arith.constant 0 : index
    %c0_22 = arith.constant 0 : index
    %29 = vector.load %arg13[%c0_21, %c0_22] : memref<8x8xf32, #tpu.memory_space<vmem>>, vector<8x8xf32>
    tpu.vector_store %arg13[%c0_21, %c0_22], %28 {strides = array<i32>} : memref<8x8xf32, #tpu.memory_space<vmem>>, vector<8x8xf32>,
    %c0_i32_23 = arith.constant 0 : i32
    %30 = arith.cmpi eq, %arg3, %c0_i32_23 : i32
    %31 = arith.extui %30 : i1 to i32
    %c0_i32_24 = arith.constant 0 : i32
    %32 = arith.cmpi ne, %31, %c0_i32_24 : i32
    scf.if %32 {
      %c0_27 = arith.constant 0 : index
      %c0_28 = arith.constant 0 : index
      %38 = vector.load %arg14[%c0_27, %c0_28] : memref<8x32xf32, #tpu.memory_space<vmem>>, vector<8x32xf32>
      %c0_29 = arith.constant 0 : index
      %c0_30 = arith.constant 0 : index
      %39 = vector.load %arg13[%c0_29, %c0_30] : memref<8x8xf32, #tpu.memory_space<vmem>>, vector<8x8xf32>
      %c0_31 = arith.constant 0 : index
      %c0_32 = arith.constant 0 : index
      %c0_33 = arith.constant 0 : index
      %40 = vector.load %arg10[%c0_31, %c0_32, %c0_33] : memref<1x8x32xf32, #tpu.memory_space<vmem>>, vector<1x8x32xf32>
      %41 = vector.shape_cast %40 : vector<1x8x32xf32> to vector<8x32xf32>
      %cst_34 = arith.constant dense<0.000000e+00> : vector<8x32xf32>
      %42 = tpu.matmul %39, %41, %cst_34 {dimension_numbers = #tpu.dot_dimension_numbers<[1], [0], [0], [1], [0, 0, 1, 1], [], []>} : vector<8x8xf32>, vector<8x32xf32>, vector<8x32xf32> -> vector<8x32xf32>
      %43 = arith.addf %38, %42 : vector<8x32xf32>
      %c0_35 = arith.constant 0 : index
      %c0_36 = arith.constant 0 : index
      %44 = vector.load %arg14[%c0_35, %c0_36] : memref<8x32xf32, #tpu.memory_space<vmem>>, vector<8x32xf32>
      tpu.vector_store %arg14[%c0_35, %c0_36], %43 {strides = array<i32>} : memref<8x32xf32, #tpu.memory_space<vmem>>, vector<8x32xf32>,
    } else {
    }
    %c3_i32 = arith.constant 3 : i32
    %33 = arith.cmpi eq, %arg2, %c3_i32 : i32
    %c0_i32_25 = arith.constant 0 : i32
    %34 = arith.cmpi eq, %arg3, %c0_i32_25 : i32
    %35 = arith.andi %33, %34 : i1
    %36 = arith.extui %35 : i1 to i32
    %c0_i32_26 = arith.constant 0 : i32
    %37 = arith.cmpi ne, %36, %c0_i32_26 : i32
    scf.if %37 {
      %c0_27 = arith.constant 0 : index
      %c0_28 = arith.constant 0 : index
      %38 = vector.load %arg14[%c0_27, %c0_28] : memref<8x32xf32, #tpu.memory_space<vmem>>, vector<8x32xf32>
      %c0_29 = arith.constant 0 : index
      %c0_30 = arith.constant 0 : index
      %c0_31 = arith.constant 0 : index
      %39 = vector.load %arg11[%c0_29, %c0_30, %c0_31] : memref<1x8x32xf32, #tpu.memory_space<vmem>>, vector<1x8x32xf32>
      %40 = vector.shape_cast %39 : vector<1x8x32xf32> to vector<8x32xf32>
      %41 = vector.shape_cast %38 : vector<8x32xf32> to vector<1x8x32xf32>
      tpu.vector_store %arg11[%c0_29, %c0_30, %c0_31], %41 {strides = array<i32>} : memref<1x8x32xf32, #tpu.memory_space<vmem>>, vector<1x8x32xf32>,
    } else {
    }
    return
  }
  func.func @transform_0(%arg0: i32, %arg1: i32, %arg2: i32, %arg3: i32) -> (i32, i32, i32) {
    %c0_i32 = arith.constant 0 : i32
    %c0_i32_0 = arith.constant 0 : i32
    return %arg0, %arg1, %c0_i32 : i32, i32, i32
  }
  func.func @transform_1(%arg0: i32, %arg1: i32, %arg2: i32, %arg3: i32) -> (i32, i32, i32, i32) {
    %c0_i32 = arith.constant 0 : i32
    %c0_i32_0 = arith.constant 0 : i32
    return %arg0, %arg2, %arg3, %c0_i32 : i32, i32, i32, i32
  }
  func.func @transform_2(%arg0: i32, %arg1: i32, %arg2: i32, %arg3: i32) -> (i32, i32, i32, i32) {
    %c0_i32 = arith.constant 0 : i32
    %c0_i32_0 = arith.constant 0 : i32
    return %arg0, %arg2, %arg3, %c0_i32 : i32, i32, i32, i32
  }
  func.func @transform_3(%arg0: i32, %arg1: i32, %arg2: i32, %arg3: i32) -> (i32, i32, i32) {
    %c0_i32 = arith.constant 0 : i32
    return %arg0, %arg1, %arg3 : i32, i32, i32
  }
  func.func @transform_4(%arg0: i32, %arg1: i32, %arg2: i32, %arg3: i32) -> (i32, i32, i32) {
    %c0_i32 = arith.constant 0 : i32
    %c0_i32_0 = arith.constant 0 : i32
    %c0_i32_1 = arith.constant 0 : i32
    return %arg2, %c0_i32, %c0_i32_0 : i32, i32, i32
  }
  func.func @transform_5(%arg0: i32, %arg1: i32, %arg2: i32, %arg3: i32) -> (i32, i32, i32) {
    %c0_i32 = arith.constant 0 : i32
    %c0_i32_0 = arith.constant 0 : i32
    %c0_i32_1 = arith.constant 0 : i32
    return %arg2, %c0_i32, %c0_i32_0 : i32, i32, i32
  }
  func.func @transform_6(%arg0: i32, %arg1: i32, %arg2: i32, %arg3: i32) -> (i32, i32, i32) {
    %c0_i32 = arith.constant 0 : i32
    %c0_i32_0 = arith.constant 0 : i32
    %c0_i32_1 = arith.constant 0 : i32
    return %arg2, %c0_i32, %c0_i32_0 : i32, i32, i32
  }
  func.func @transform_7(%arg0: i32, %arg1: i32, %arg2: i32, %arg3: i32) -> (i32, i32, i32) {
    %c0_i32 = arith.constant 0 : i32
    %c0_i32_0 = arith.constant 0 : i32
    return %arg0, %arg1, %c0_i32 : i32, i32, i32
  }
}

</mosaic_0001>

<llo_original>
// kernel: tpu_custom_call.1
$region0: #{tpu_custom_call.1}
  #allocation0 [shape = 'u32[]', space=smem, size = 0x4, offset = 0x4, fixed_abs, tag = 'smem constant byte address 0x4 - core index']
  #allocation1 [shape = 'u32[144,128]{1,0:T(1,128)}', space=vmem, size = 0x12000, scoped, tag = 'internal scratch']
  #allocation2 [shape = 'f32[8,8]{1,0:T(8,128)}', space=vmem, size = 0x1000, scoped, tag = 'scratch operand']
  #allocation3 [shape = 'f32[8,8]{1,0:T(8,128)}', space=vmem, size = 0x1000, scoped, tag = 'scratch operand']
  #allocation4 [shape = 'f32[8,32]{1,0:T(8,128)}', space=vmem, size = 0x1000, scoped, tag = 'scratch operand']
  %s0 = inlined_call_operand.hbm [shape: f32[2,8,32], index: 0, kind: input, shape index: {}]
  %s1 = inlined_call_operand.vmem [shape: f32[2,4,8,8], index: 1, kind: input, shape index: {}]
  %s2 = inlined_call_operand.vmem [shape: f32[2,4,8,8], index: 2, kind: input, shape index: {}]
  %s3 = inlined_call_operand.vmem [shape: s8[2,8,8], index: 3, kind: input, shape index: {}]
  %s4 = inlined_call_operand.vmem [shape: f32[4,32,8], index: 4, kind: input, shape index: {}]
  %s5 = inlined_call_operand.vmem [shape: f32[4,1,8], index: 5, kind: input, shape index: {}]
  %s6 = inlined_call_operand.vmem [shape: f32[4,8,32], index: 6, kind: input, shape index: {}]
  %s7 = inlined_call_operand.hbm [shape: f32[2,8,32], index: 7, kind: output, shape index: {}]
  %s8 = sld [smem:[#allocation0]]
  $region81: #{tpu_custom_call.1} parent=0
    _
  %s10 = ssub.s32 1, %s8
  %s11 = scalar_select 0, %s10, %s8
  $region1: #{tpu_custom_call.1} parent=0
    #allocation5 [shape = 'u8[8192]{0}', space=vmem, size = 0x2000, scoped, tag = 'input window, operand 0']
    #allocation6 [shape = 's32[2]{0}', space=sflag, size = 0x8, scoped, tag = 'scoped memory for tpu_custom_call.1']
    #allocation7 [shape = 's32[2]{0}', space=sflag, size = 0x8, scoped, tag = 'scoped memory for tpu_custom_call.1']
    #allocation8 [shape = 'u8[8192]{0}', space=vmem, size = 0x2000, scoped, tag = 'output window, operand 0']
    %12 = vsyncpa [#allocation6], 0
    %s13 = scalar_lea.sflag [#allocation6], 1
    %14 = vsyncpa %s13, 0
    %15 = vsyncpa [#allocation7], 0
    %s16 = scalar_lea.sflag [#allocation7], 1
    %17 = vsyncpa %s16, 0
    loop: start=0, step=1, limit=10
    $region2: #{tpu_custom_call.1} parent=1 // loop_pre_header
      _
    $region3: #{tpu_custom_call.1} parent=1 // loop_header
      %s19 = sphi 0, %s23
      %p20 = scmp.ge.s32.totalorder %s19, 10
      %s26 = sphi 0, %s52
      %s27 = sphi 0, %s48
      %s28 = sphi 0, %s44
      %s29 = sphi 0, %s40
      %s30 = sphi 0, %s26
      %s31 = sphi 0, %s27
      %s32 = sphi 0, %s28
      %s33 = sphi 0, %s29
      %s34 = sphi 0, %s30
      %s35 = sphi 0, %s31
      %s36 = sphi 0, %s32
      %s37 = sphi 0, %s33
      %s57 = sphi 0, %s59
      %s60 = sphi 0, %s57
      %s61 = sphi 0, %s60
      %s77 = sphi 0, %s61
      %s87 = sphi 0, %s89
      %s90 = sphi 0, %s87
      %s91 = sphi 0, %s90
      %s107 = sphi 0, %s91
      %s117 = sphi 0, %s119
      %s120 = sphi 0, %s117
      %s121 = sphi 0, %s120
      %s137 = sphi 0, %s121
      %s147 = sphi 0, %s149
      %s150 = sphi 0, %s147
      %s151 = sphi 0, %s150
      %s167 = sphi 0, %s151
      %s173 = sphi 0, %s175
      %s176 = sphi 0, %s173
      %s177 = sphi 0, %s176
      %s193 = sphi 0, %s177
      %s199 = sphi 0, %s201
      %s202 = sphi 0, %s199
      %s203 = sphi 0, %s202
      %s219 = sphi 0, %s203
      %s225 = sphi 0, %s227
      %s228 = sphi 0, %s225
      %s229 = sphi 0, %s228
      %s245 = sphi 0, %s229
      %s253 = sphi 0, %s255
      %s256 = sphi 0, %s253
      %s257 = sphi 0, %s256
      %s273 = sphi 0, %s257
    $region4: #{tpu_custom_call.1} parent=1 // loop_header_branch
      %22 = sbr.rel (%p20) target = $region8
    $region5: #{tpu_custom_call.1} parent=1 // loop_body
      %s24 = ssub.s32 %s19, 1
      %s25 = ssub.s32 %s19, 2
      %s38 = sadd.s32 1, %s29
      %p39 = scmp.ge.s32.totalorder %s38, 1
      %s40 = scalar_select %p39, 0, %s38
      %s41 = sadd.s32 1, %s28
      %s42 = scalar_select %p39, %s41, %s28
      %p43 = scmp.ge.s32.totalorder %s42, 4
      %s44 = scalar_select %p43, 0, %s42
      %s45 = sadd.s32 1, %s27
      %s46 = scalar_select %p43, %s45, %s27
      %p47 = scmp.ge.s32.totalorder %s46, 1
      %s48 = scalar_select %p47, 0, %s46
      %s49 = sadd.s32 1, %s26
      %s50 = scalar_select %p47, %s49, %s26
      %p51 = scmp.ge.s32.totalorder %s50, 2
      %s52 = scalar_select %p51, 0, %s50
      %s53 = ssub.s32 %s26, %s52
      %s54 = ssub.s32 %s27, %s48
      %s55 = sor.u32 %s53, %s54
      %p56 = scmp.eq.s32.totalorder %s55, 0
      %s58 = sadd.s32 %s57, 1
      %s59 = scalar_select %p56, %s57, %s58
      %p62 = pneg %p56
      %p63 = scmp.eq.s32.totalorder %s19, 7
      %p64 = por %p62, %p63
      %p65 = scmp.ne.s32.totalorder %s57, %s60
      %p66 = scmp.eq.s32.totalorder %s19, 0
      %p67 = por %p65, %p66
      %p68 = scmp.ne.s32.totalorder %s57, %s60
      %p69 = scmp.eq.s32.totalorder %s24, 7
      %p70 = por %p68, %p69
      %p71 = scmp.ne.s32.totalorder %s60, %s61
      %p72 = scmp.eq.s32.totalorder %s24, 0
      %p73 = por %p71, %p72
      %p74 = scmp.ne.s32.totalorder %s60, %s61
      %p75 = scmp.eq.s32.totalorder %s25, 7
      %p76 = por %p74, %p75
      %p78 = scmp.ne.s32.totalorder %s61, %s77
      %p79 = scmp.eq.s32.totalorder %s25, 0
      %p80 = por %p78, %p79
      %s81 = ssub.s32 %s26, %s52
      %s82 = ssub.s32 %s28, %s44
      %s83 = sor.u32 %s81, %s82
      %s84 = ssub.s32 %s29, %s40
      %s85 = sor.u32 %s83, %s84
      %p86 = scmp.eq.s32.totalorder %s85, 0
      %s88 = sadd.s32 %s87, 1
      %s89 = scalar_select %p86, %s87, %s88
      %p92 = pneg %p86
      %p93 = scmp.eq.s32.totalorder %s19, 7
      %p94 = por %p92, %p93
      %p95 = scmp.ne.s32.totalorder %s87, %s90
      %p96 = scmp.eq.s32.totalorder %s19, 0
      %p97 = por %p95, %p96
      %p98 = scmp.ne.s32.totalorder %s87, %s90
      %p99 = scmp.eq.s32.totalorder %s24, 7
      %p100 = por %p98, %p99
      %p101 = scmp.ne.s32.totalorder %s90, %s91
      %p102 = scmp.eq.s32.totalorder %s24, 0
      %p103 = por %p101, %p102
      %p104 = scmp.ne.s32.totalorder %s90, %s91
      %p105 = scmp.eq.s32.totalorder %s25, 7
      %p106 = por %p104, %p105
      %p108 = scmp.ne.s32.totalorder %s91, %s107
      %p109 = scmp.eq.s32.totalorder %s25, 0
      %p110 = por %p108, %p109
      %s111 = ssub.s32 %s26, %s52
      %s112 = ssub.s32 %s28, %s44
      %s113 = sor.u32 %s111, %s112
      %s114 = ssub.s32 %s29, %s40
      %s115 = sor.u32 %s113, %s114
      %p116 = scmp.eq.s32.totalorder %s115, 0
      %s118 = sadd.s32 %s117, 1
      %s119 = scalar_select %p116, %s117, %s118
      %p122 = pneg %p116
      %p123 = scmp.eq.s32.totalorder %s19, 7
      %p124 = por %p122, %p123
      %p125 = scmp.ne.s32.totalorder %s117, %s120
      %p126 = scmp.eq.s32.totalorder %s19, 0
      %p127 = por %p125, %p126
      %p128 = scmp.ne.s32.totalorder %s117, %s120
      %p129 = scmp.eq.s32.totalorder %s24, 7
      %p130 = por %p128, %p129
      %p131 = scmp.ne.s32.totalorder %s120, %s121
      %p132 = scmp.eq.s32.totalorder %s24, 0
      %p133 = por %p131, %p132
      %p134 = scmp.ne.s32.totalorder %s120, %s121
      %p135 = scmp.eq.s32.totalorder %s25, 7
      %p136 = por %p134, %p135
      %p138 = scmp.ne.s32.totalorder %s121, %s137
      %p139 = scmp.eq.s32.totalorder %s25, 0
      %p140 = por %p138, %p139
      %s141 = ssub.s32 %s26, %s52
      %s142 = ssub.s32 %s27, %s48
      %s143 = sor.u32 %s141, %s142
      %s144 = ssub.s32 %s29, %s40
      %s145 = sor.u32 %s143, %s144
      %p146 = scmp.eq.s32.totalorder %s145, 0
      %s148 = sadd.s32 %s147, 1
      %s149 = scalar_select %p146, %s147, %s148
      %p152 = pneg %p146
      %p153 = scmp.eq.s32.totalorder %s19, 7
      %p154 = por %p152, %p153
      %p155 = scmp.ne.s32.totalorder %s147, %s150
      %p156 = scmp.eq.s32.totalorder %s19, 0
      %p157 = por %p155, %p156
      %p158 = scmp.ne.s32.totalorder %s147, %s150
      %p159 = scmp.eq.s32.totalorder %s24, 7
      %p160 = por %p158, %p159
      %p161 = scmp.ne.s32.totalorder %s150, %s151
      %p162 = scmp.eq.s32.totalorder %s24, 0
      %p163 = por %p161, %p162
      %p164 = scmp.ne.s32.totalorder %s150, %s151
      %p165 = scmp.eq.s32.totalorder %s25, 7
      %p166 = por %p164, %p165
      %p168 = scmp.ne.s32.totalorder %s151, %s167
      %p169 = scmp.eq.s32.totalorder %s25, 0
      %p170 = por %p168, %p169
      %s171 = ssub.s32 %s28, %s44
      %p172 = scmp.eq.s32.totalorder %s171, 0
      %s174 = sadd.s32 %s173, 1
      %s175 = scalar_select %p172, %s173, %s174
      %p178 = pneg %p172
      %p179 = scmp.eq.s32.totalorder %s19, 7
      %p180 = por %p178, %p179
      %p181 = scmp.ne.s32.totalorder %s173, %s176
      %p182 = scmp.eq.s32.totalorder %s19, 0
      %p183 = por %p181, %p182
      %p184 = scmp.ne.s32.totalorder %s173, %s176
      %p185 = scmp.eq.s32.totalorder %s24, 7
      %p186 = por %p184, %p185
      %p187 = scmp.ne.s32.totalorder %s176, %s177
      %p188 = scmp.eq.s32.totalorder %s24, 0
      %p189 = por %p187, %p188
      %p190 = scmp.ne.s32.totalorder %s176, %s177
      %p191 = scmp.eq.s32.totalorder %s25, 7
      %p192 = por %p190, %p191
      %p194 = scmp.ne.s32.totalorder %s177, %s193
      %p195 = scmp.eq.s32.totalorder %s25, 0
      %p196 = por %p194, %p195
      %s197 = ssub.s32 %s28, %s44
      %p198 = scmp.eq.s32.totalorder %s197, 0
      %s200 = sadd.s32 %s199, 1
      %s201 = scalar_select %p198, %s199, %s200
      %p204 = pneg %p198
      %p205 = scmp.eq.s32.totalorder %s19, 7
      %p206 = por %p204, %p205
      %p207 = scmp.ne.s32.totalorder %s199, %s202
      %p208 = scmp.eq.s32.totalorder %s19, 0
      %p209 = por %p207, %p208
      %p210 = scmp.ne.s32.totalorder %s199, %s202
      %p211 = scmp.eq.s32.totalorder %s24, 7
      %p212 = por %p210, %p211
      %p213 = scmp.ne.s32.totalorder %s202, %s203
      %p214 = scmp.eq.s32.totalorder %s24, 0
      %p215 = por %p213, %p214
      %p216 = scmp.ne.s32.totalorder %s202, %s203
      %p217 = scmp.eq.s32.totalorder %s25, 7
      %p218 = por %p216, %p217
      %p220 = scmp.ne.s32.totalorder %s203, %s219
      %p221 = scmp.eq.s32.totalorder %s25, 0
      %p222 = por %p220, %p221
      %s223 = ssub.s32 %s28, %s44
      %p224 = scmp.eq.s32.totalorder %s223, 0
      %s226 = sadd.s32 %s225, 1
      %s227 = scalar_select %p224, %s225, %s226
      %p230 = pneg %p224
      %p231 = scmp.eq.s32.totalorder %s19, 7
      %p232 = por %p230, %p231
      %p233 = scmp.ne.s32.totalorder %s225, %s228
      %p234 = scmp.eq.s32.totalorder %s19, 0
      %p235 = por %p233, %p234
      %p236 = scmp.ne.s32.totalorder %s225, %s228
      %p237 = scmp.eq.s32.totalorder %s24, 7
      %p238 = por %p236, %p237
      %p239 = scmp.ne.s32.totalorder %s228, %s229
      %p240 = scmp.eq.s32.totalorder %s24, 0
      %p241 = por %p239, %p240
      %p242 = scmp.ne.s32.totalorder %s228, %s229
      %p243 = scmp.eq.s32.totalorder %s25, 7
      %p244 = por %p242, %p243
      %p246 = scmp.ne.s32.totalorder %s229, %s245
      %p247 = scmp.eq.s32.totalorder %s25, 0
      %p248 = por %p246, %p247
      %s249 = ssub.s32 %s26, %s52
      %s250 = ssub.s32 %s27, %s48
      %s251 = sor.u32 %s249, %s250
      %p252 = scmp.eq.s32.totalorder %s251, 0
      %s254 = sadd.s32 %s253, 1
      %s255 = scalar_select %p252, %s253, %s254
      %p258 = pneg %p252
      %p259 = scmp.eq.s32.totalorder %s19, 7
      %p260 = por %p258, %p259
      %p261 = scmp.ne.s32.totalorder %s253, %s256
      %p262 = scmp.eq.s32.totalorder %s19, 0
      %p263 = por %p261, %p262
      %p264 = scmp.ne.s32.totalorder %s253, %s256
      %p265 = scmp.eq.s32.totalorder %s24, 7
      %p266 = por %p264, %p265
      %p267 = scmp.ne.s32.totalorder %s256, %s257
      %p268 = scmp.eq.s32.totalorder %s24, 0
      %p269 = por %p267, %p268
      %p270 = scmp.ne.s32.totalorder %s256, %s257
      %p271 = scmp.eq.s32.totalorder %s25, 7
      %p272 = por %p270, %p271
      %p274 = scmp.ne.s32.totalorder %s257, %s273
      %p275 = scmp.eq.s32.totalorder %s25, 0
      %p276 = por %p274, %p275
      %p277 = scmp.le.s32.totalorder 1, %s19
      %p278 = scmp.lt.s32.totalorder %s19, 9
      %p279 = pnand %p277, %p278
      %p280 = pneg %p279
      // Predicated region
      $region9: #{tpu_custom_call.1} parent=5 // pred_check
        _
      $region10: #{tpu_custom_call.1} parent=5 // pred_check_branch
        %282 = sbr.rel (%p279) target = $region12
      $region11: #{tpu_custom_call.1} parent=5 // pred_region
        %s283 = ssub.s32 %s19, 1
      $region12: #{tpu_custom_call.1} parent=5 // pred_fallthru
        _
      %p284 = scmp.lt.s32.totalorder %s19, 8
      // Predicated region
      $region13: #{tpu_custom_call.1} parent=5 // pred_check
        %p285 = pneg %p284
      $region14: #{tpu_custom_call.1} parent=5 // pred_check_branch
        %287 = sbr.rel (%p285) target = $region16
      $region15: #{tpu_custom_call.1} parent=5 // pred_region
        // Predicated region
        $region17: #{tpu_custom_call.1} parent=15 // pred_check
          %p288 = pneg %p67
        $region18: #{tpu_custom_call.1} parent=15 // pred_check_branch
          %290 = sbr.rel (%p288) target = $region20
        $region19: #{tpu_custom_call.1} parent=15 // pred_region
          %s291 = sand.u32 %s57, 1
          %s292 = scalar_lea.sflag [#allocation6], %s291
          %s293 = sand.u32 %s57, 1
          %s294 = smul.addr %s293, 8
          %s295 = scalar_lea.vmem [#allocation5], %s294
          %s297 = ssub.s32 128, 128
          %298 = vsyncadd %s292, %s297
          %s299 = sadd.s32 %s27, %s26
          %s300 = smul.addr %s299, 128
          %s301 = scalar_lea.hbm %s0, %s300
          %s303 = sshll.u32 %s295, 4
          %s304 = int_to_ptr.vmem [resolvable:$true] %s303
          %306 = dma.hbm_to_vmem [thread:$0]  %s301, 128, %s304, %s292
        $region20: #{tpu_custom_call.1} parent=15 // pred_fallthru
          _
        // Predicated region
        $region21: #{tpu_custom_call.1} parent=15 // pred_check
          %p307 = pneg %p97
        $region22: #{tpu_custom_call.1} parent=15 // pred_check_branch
          %309 = sbr.rel (%p307) target = $region24
        $region23: #{tpu_custom_call.1} parent=15 // pred_region
          %p310 = scmp.lt.s32.totalorder %s26, 1
          %s311 = scalar_select %p310, %s26, 1
          %p312 = scmp.lt.s32.totalorder %s28, 3
          %s313 = scalar_select %p312, %s28, 3
          %p314 = scmp.lt.s32.totalorder %s29, 0
          %s315 = scalar_select %p314, %s29, 0
          %s316 = sadd.s32 %s315, %s313
          %s317 = smul.addr %s311, 4
          %s318 = sadd.s32 %s316, %s317
          %s319 = smul.addr %s318, 8
          %s320 = scalar_lea.vmem %s1, %s319
        $region24: #{tpu_custom_call.1} parent=15 // pred_fallthru
          _
        // Predicated region
        $region25: #{tpu_custom_call.1} parent=15 // pred_check
          %p321 = pneg %p127
        $region26: #{tpu_custom_call.1} parent=15 // pred_check_branch
          %323 = sbr.rel (%p321) target = $region28
        $region27: #{tpu_custom_call.1} parent=15 // pred_region
          %p324 = scmp.lt.s32.totalorder %s26, 1
          %s325 = scalar_select %p324, %s26, 1
          %p326 = scmp.lt.s32.totalorder %s28, 3
          %s327 = scalar_select %p326, %s28, 3
          %p328 = scmp.lt.s32.totalorder %s29, 0
          %s329 = scalar_select %p328, %s29, 0
          %s330 = sadd.s32 %s329, %s327
          %s331 = smul.addr %s325, 4
          %s332 = sadd.s32 %s330, %s331
          %s333 = smul.addr %s332, 8
          %s334 = scalar_lea.vmem %s2, %s333
        $region28: #{tpu_custom_call.1} parent=15 // pred_fallthru
          _
        // Predicated region
        $region29: #{tpu_custom_call.1} parent=15 // pred_check
          %p335 = pneg %p157
        $region30: #{tpu_custom_call.1} parent=15 // pred_check_branch
          %337 = sbr.rel (%p335) target = $region32
        $region31: #{tpu_custom_call.1} parent=15 // pred_region
          %p338 = scmp.lt.s32.totalorder %s26, 1
          %s339 = scalar_select %p338, %s26, 1
          %p340 = scmp.lt.s32.totalorder %s27, 0
          %s341 = scalar_select %p340, %s27, 0
          %p342 = scmp.lt.s32.totalorder %s29, 0
          %s343 = scalar_select %p342, %s29, 0
          %s344 = sadd.s32 %s343, %s341
          %s345 = sadd.s32 %s344, %s339
          %s346 = smul.addr %s345, 2
          %s347 = scalar_lea.vmem %s3, %s346
        $region32: #{tpu_custom_call.1} parent=15 // pred_fallthru
          _
        // Predicated region
        $region33: #{tpu_custom_call.1} parent=15 // pred_check
          %p348 = pneg %p183
        $region34: #{tpu_custom_call.1} parent=15 // pred_check_branch
          %350 = sbr.rel (%p348) target = $region36
        $region35: #{tpu_custom_call.1} parent=15 // pred_region
          %p351 = scmp.lt.s32.totalorder %s28, 3
          %s352 = scalar_select %p351, %s28, 3
          %s353 = smul.addr %s352, 4
          %s354 = smul.addr %s353, 8
          %s355 = scalar_lea.vmem %s4, %s354
        $region36: #{tpu_custom_call.1} parent=15 // pred_fallthru
          _
        // Predicated region
        $region37: #{tpu_custom_call.1} parent=15 // pred_check
          %p356 = pneg %p209
        $region38: #{tpu_custom_call.1} parent=15 // pred_check_branch
          %358 = sbr.rel (%p356) target = $region40
        $region39: #{tpu_custom_call.1} parent=15 // pred_region
          %p359 = scmp.lt.s32.totalorder %s28, 3
          %s360 = scalar_select %p359, %s28, 3
          %s361 = scalar_lea.vmem %s5, %s360
        $region40: #{tpu_custom_call.1} parent=15 // pred_fallthru
          _
        // Predicated region
        $region41: #{tpu_custom_call.1} parent=15 // pred_check
          %p362 = pneg %p235
        $region42: #{tpu_custom_call.1} parent=15 // pred_check_branch
          %364 = sbr.rel (%p362) target = $region44
        $region43: #{tpu_custom_call.1} parent=15 // pred_region
          %p365 = scmp.lt.s32.totalorder %s28, 3
          %s366 = scalar_select %p365, %s28, 3
          %s367 = smul.addr %s366, 8
          %s368 = scalar_lea.vmem %s6, %s367
        $region44: #{tpu_custom_call.1} parent=15 // pred_fallthru
          _
      $region16: #{tpu_custom_call.1} parent=5 // pred_fallthru
        _
      %p369 = scmp.le.s32.totalorder 1, %s19
      %p370 = scmp.lt.s32.totalorder %s19, 9
      %p371 = pnand %p369, %p370
      %p372 = pneg %p371
      // Predicated region
      $region45: #{tpu_custom_call.1} parent=5 // pred_check
        _
      $region46: #{tpu_custom_call.1} parent=5 // pred_check_branch
        %374 = sbr.rel (%p371) target = $region48
      $region47: #{tpu_custom_call.1} parent=5 // pred_region
        %s375 = ssub.s32 %s19, 1
        %s376 = sand.u32 %s60, 1
        %s377 = scalar_lea.sflag [#allocation6], %s376
        %s378 = sand.u32 %s60, 1
        %s379 = smul.addr %s378, 8
        %s380 = scalar_lea.vmem [#allocation5], %s379
        // Predicated region
        $region49: #{tpu_custom_call.1} parent=47 // pred_check
          %p381 = pneg %p73
        $region50: #{tpu_custom_call.1} parent=47 // pred_check_branch
          %383 = sbr.rel (%p381) target = $region52
        $region51: #{tpu_custom_call.1} parent=47 // pred_region
          %384 = dma.done %s377, 128
        $region52: #{tpu_custom_call.1} parent=47 // pred_fallthru
          _
        %s385 = sand.u32 %s60, 1
        %s386 = scalar_lea.sflag [#allocation6], %s385
        %s387 = sand.u32 %s60, 1
        %s388 = smul.addr %s387, 8
        %s389 = scalar_lea.vmem [#allocation5], %s388
        %p390 = pneg %p73
        %p391 = pneg %p70
        %p392 = scmp.lt.s32.totalorder %s30, 1
        %s393 = scalar_select %p392, %s30, 1
        %p394 = scmp.lt.s32.totalorder %s32, 3
        %s395 = scalar_select %p394, %s32, 3
        %p396 = scmp.lt.s32.totalorder %s33, 0
        %s397 = scalar_select %p396, %s33, 0
        %s398 = sadd.s32 %s397, %s395
        %s399 = smul.addr %s393, 4
        %s400 = sadd.s32 %s398, %s399
        %s401 = smul.addr %s400, 8
        %s402 = scalar_lea.vmem %s1, %s401
        %p403 = pneg %p103
        %p404 = pneg %p100
        %p405 = scmp.lt.s32.totalorder %s30, 1
        %s406 = scalar_select %p405, %s30, 1
        %p407 = scmp.lt.s32.totalorder %s32, 3
        %s408 = scalar_select %p407, %s32, 3
        %p409 = scmp.lt.s32.totalorder %s33, 0
        %s410 = scalar_select %p409, %s33, 0
        %s411 = sadd.s32 %s410, %s408
        %s412 = smul.addr %s406, 4
        %s413 = sadd.s32 %s411, %s412
        %s414 = smul.addr %s413, 8
        %s415 = scalar_lea.vmem %s2, %s414
        %p416 = pneg %p133
        %p417 = pneg %p130
        %p418 = scmp.lt.s32.totalorder %s30, 1
        %s419 = scalar_select %p418, %s30, 1
        %p420 = scmp.lt.s32.totalorder %s31, 0
        %s421 = scalar_select %p420, %s31, 0
        %p422 = scmp.lt.s32.totalorder %s33, 0
        %s423 = scalar_select %p422, %s33, 0
        %s424 = sadd.s32 %s423, %s421
        %s425 = sadd.s32 %s424, %s419
        %s426 = smul.addr %s425, 2
        %s427 = scalar_lea.vmem %s3, %s426
        %p428 = pneg %p163
        %p429 = pneg %p160
        %p430 = scmp.lt.s32.totalorder %s32, 3
        %s431 = scalar_select %p430, %s32, 3
        %s432 = smul.addr %s431, 4
        %s433 = smul.addr %s432, 8
        %s434 = scalar_lea.vmem %s4, %s433
        %p435 = pneg %p189
        %p436 = pneg %p186
        %p437 = scmp.lt.s32.totalorder %s32, 3
        %s438 = scalar_select %p437, %s32, 3
        %s439 = scalar_lea.vmem %s5, %s438
        %p440 = pneg %p215
        %p441 = pneg %p212
        %p442 = scmp.lt.s32.totalorder %s32, 3
        %s443 = scalar_select %p442, %s32, 3
        %s444 = smul.addr %s443, 8
        %s445 = scalar_lea.vmem %s6, %s444
        %p446 = pneg %p241
        %p447 = pneg %p238
        %p448 = pneg %p269
        %p449 = pneg %p266
        %s450 = sand.u32 %s256, 1
        %s451 = scalar_lea.sflag [#allocation7], %s450
        %s452 = sand.u32 %s256, 1
        %s453 = smul.addr %s452, 8
        %s454 = scalar_lea.vmem [#allocation8], %s453
        %p455 = scmp.lt.s32.totalorder %s30, 1
        %s456 = scalar_select %p455, %s30, 1
        %p457 = scmp.lt.s32.totalorder %s32, 3
        %s458 = scalar_select %p457, %s32, 3
        %p459 = scmp.lt.s32.totalorder %s33, 0
        %s460 = scalar_select %p459, %s33, 0
        %s461 = sadd.s32 %s460, %s458
        %s462 = smul.addr %s456, 4
        %s463 = sadd.s32 %s461, %s462
        %s464 = smul.addr %s463, 8
        %s465 = scalar_lea.vmem %s1, %s464
        %p466 = scmp.lt.s32.totalorder %s30, 1
        %s467 = scalar_select %p466, %s30, 1
        %p468 = scmp.lt.s32.totalorder %s32, 3
        %s469 = scalar_select %p468, %s32, 3
        %p470 = scmp.lt.s32.totalorder %s33, 0
        %s471 = scalar_select %p470, %s33, 0
        %s472 = sadd.s32 %s471, %s469
        %s473 = smul.addr %s467, 4
        %s474 = sadd.s32 %s472, %s473
        %s475 = smul.addr %s474, 8
        %s476 = scalar_lea.vmem %s2, %s475
        %p477 = scmp.lt.s32.totalorder %s30, 1
        %s478 = scalar_select %p477, %s30, 1
        %p479 = scmp.lt.s32.totalorder %s31, 0
        %s480 = scalar_select %p479, %s31, 0
        %p481 = scmp.lt.s32.totalorder %s33, 0
        %s482 = scalar_select %p481, %s33, 0
        %s483 = sadd.s32 %s482, %s480
        %s484 = sadd.s32 %s483, %s478
        %s485 = smul.addr %s484, 2
        %s486 = scalar_lea.vmem %s3, %s485
        %p487 = scmp.lt.s32.totalorder %s32, 3
        %s488 = scalar_select %p487, %s32, 3
        %s489 = smul.addr %s488, 4
        %s490 = smul.addr %s489, 8
        %s491 = scalar_lea.vmem %s4, %s490
        %p492 = scmp.lt.s32.totalorder %s32, 3
        %s493 = scalar_select %p492, %s32, 3
        %s494 = scalar_lea.vmem %s5, %s493
        %p495 = scmp.lt.s32.totalorder %s32, 3
        %s496 = scalar_select %p495, %s32, 3
        %s497 = smul.addr %s496, 8
        %s498 = scalar_lea.vmem %s6, %s497
        %p501 = scmp.eq.s32.totalorder %s32, 0
        %p502 = scmp.eq.s32.totalorder %s33, 0
        %p503 = pnand %p501, %p502
        %p504 = pneg %p503
        // Predicated region
        $region53: #{tpu_custom_call.1} parent=47 // pred_check
          _
        $region54: #{tpu_custom_call.1} parent=47 // pred_check_branch
          %506 = sbr.rel (%p503) target = $region56
        $region55: #{tpu_custom_call.1} parent=47 // pred_region
          %vm507 = vcmask 261120
          %508 = vst.msk [vmem:[#allocation4] sm:$0xff] %vm507, 0.0
        $region56: #{tpu_custom_call.1} parent=47 // pred_fallthru
          _
        // Predicated region
        $region57: #{tpu_custom_call.1} parent=47 // pred_check
          %p509 = pneg %p502
        $region58: #{tpu_custom_call.1} parent=47 // pred_check_branch
          %511 = sbr.rel (%p509) target = $region60
        $region59: #{tpu_custom_call.1} parent=47 // pred_region
          %v512 = vld [vmem:[%s380] sm:$0xff]
          %v513 = vld [vmem:[%s491] sm:$0xff]
          %v514 = vld [vmem:[%s491 + $0x8] sm:$0xff]
          %v515 = vld [vmem:[%s491 + $0x10] sm:$0xff]
          %v516 = vld [vmem:[%s491 + $0x18] sm:$0xff]
          %v517 = vld [vmem:[%s494] sm:$0x1]
          %v519 = vlaneseq
          %v520 = vshrl.u32 %v519, 7
          %v521 = vsub.s32 0, %v520
          %v522 = vrot.slane %v517, %v521
          %vm524 = vcmask 261120
          %v526 = vsel %vm524, %v512, 0
          %528 = vmatprep.subr.mxu0 0.0
          %529 = vmatpush1.msra.mxu0 %v513
          %530 = vmatprep.subr.mxu0 0.0
          %531 = vmatpush1.msra.mxu0 %v514
          %532 = vmatprep.subr.mxu0 0.0
          %533 = vmatpush1.msra.mxu0 %v515
          %534 = vmatprep.subr.mxu0 0.0
          %535 = vmatpush1.msra.mxu0 %v516
          %536 = vmatprep.subr.mxu0 0.0
          %537 = vmatpush1.msra.mxu0 0.0
          %538 = vmatprep.subr.mxu0 0.0
          %539 = vmatpush1.msra.mxu0 0.0
          %540 = vmatprep.subr.mxu0 0.0
          %541 = vmatpush1.msra.mxu0 0.0
          %542 = vmatprep.subr.mxu0 0.0
          %543 = vmatpush1.msra.mxu0 0.0
          %544 = vmatprep.subr.mxu0 0.0
          %545 = vmatpush1.msra.mxu0 0.0
          %546 = vmatprep.subr.mxu0 0.0
          %547 = vmatpush1.msra.mxu0 0.0
          %548 = vmatprep.subr.mxu0 0.0
          %549 = vmatpush1.msra.mxu0 0.0
          %550 = vmatprep.subr.mxu0 0.0
          %551 = vmatpush1.msra.mxu0 0.0
          %552 = vmatprep.subr.mxu0 0.0
          %553 = vmatpush1.msra.mxu0 0.0
          %554 = vmatprep.subr.mxu0 0.0
          %555 = vmatpush1.msra.mxu0 0.0
          %556 = vmatprep.subr.mxu0 0.0
          %557 = vmatpush1.msra.mxu0 0.0
          %558 = vmatprep.subr.mxu0 0.0
          %559 = vmatpush1.msra.mxu0 0.0
          %560 = vmatprep.subr.mxu0 0.0
          %561 = vmatpush1.msra.mxu0 0.0
          %562 = vmatprep.subr.mxu0 0.0
          %563 = vmatpush1.msra.mxu0 0.0
          %564 = vmatprep.subr.mxu0 0.0
          %565 = vmatpush1.msra.mxu0 0.0
          %566 = vmatprep.subr.mxu0 0.0
          %567 = vmatpush1.msra.mxu0 0.0
          %568 = vmatprep.subr.mxu0 0.0
          %569 = vmatpush1.msra.mxu0 0.0
          %570 = vmatprep.subr.mxu0 0.0
          %571 = vmatpush1.msra.mxu0 0.0
          %572 = vmatprep.subr.mxu0 0.0
          %573 = vmatpush1.msra.mxu0 0.0
          %574 = vmatprep.subr.mxu0 0.0
          %575 = vmatpush1.msra.mxu0 0.0
          %576 = vmatprep.subr.mxu0 0.0
          %577 = vmatpush1.msra.mxu0 0.0
          %578 = vmatprep.subr.mxu0 0.0
          %579 = vmatpush1.msra.mxu0 0.0
          %580 = vmatprep.subr.mxu0 0.0
          %581 = vmatpush1.msra.mxu0 0.0
          %582 = vmatprep.subr.mxu0 0.0
          %583 = vmatpush1.msra.mxu0 0.0
          %584 = vmatprep.subr.mxu0 0.0
          %585 = vmatpush1.msra.mxu0 0.0
          %586 = vmatprep.subr.mxu0 0.0
          %587 = vmatpush1.msra.mxu0 0.0
          %588 = vmatprep.subr.mxu0 0.0
          %589 = vmatpush1.msra.mxu0 0.0
          %590 = vmatprep.subr.mxu0 0.0
          %591 = vmatpush1.msra.mxu0 0.0
          %592 = vmatprep.mubr.f32.mxu0 0.0
          %593 = vmatmul.mubr.f32.gmra.mrb[0].mxu0 %v526
          %v594 = vpop.f32.mrb[0].mxu0
          %v595 = vadd.f32 %v522, %v594
          %v596 = vpop.f32.mrb[0].mxu0
          %597 = vdwg.mxu0
          %vm598 = vcmask 64512
          %599 = vst.msk [vmem:[#allocation2] sm:$0xff] %vm598, %v595
          %600 = vst.msk [vmem:[#allocation3] sm:$0xff] %vm598, 0.0
        $region60: #{tpu_custom_call.1} parent=47 // pred_fallthru
          _
        %v601 = vld [vmem:[%s465] sm:$0xff]
        %v602 = vld [vmem:[%s476] sm:$0xff]
        %v603 = vld [vmem:[#allocation2] sm:$0xff]
        %vm604 = vcmask 64512
        %v606 = vsel %vm604, %v603, 0
        %v609 = vsel %vm604, %v601, 0
        %611 = vmatprep.subr.mxu0 0.0
        %612 = vmatpush1.xpose.msra.mxu0 %v609
        %613 = vmatprep.subr.mxu0 0.0
        %614 = vmatpush1.xpose.msra.mxu0 0.0
        %615 = vmatprep.subr.mxu0 0.0
        %616 = vmatpush1.xpose.msra.mxu0 0.0
        %617 = vmatprep.subr.mxu0 0.0
        %618 = vmatpush1.xpose.msra.mxu0 0.0
        %619 = vmatprep.subr.mxu0 0.0
        %620 = vmatpush1.xpose.msra.mxu0 0.0
        %621 = vmatprep.subr.mxu0 0.0
        %622 = vmatpush1.xpose.msra.mxu0 0.0
        %623 = vmatprep.subr.mxu0 0.0
        %624 = vmatpush1.xpose.msra.mxu0 0.0
        %625 = vmatprep.subr.mxu0 0.0
        %626 = vmatpush1.xpose.msra.mxu0 0.0
        %627 = vmatprep.subr.mxu0 0.0
        %628 = vmatpush1.xpose.msra.mxu0 0.0
        %629 = vmatprep.subr.mxu0 0.0
        %630 = vmatpush1.xpose.msra.mxu0 0.0
        %631 = vmatprep.subr.mxu0 0.0
        %632 = vmatpush1.xpose.msra.mxu0 0.0
        %633 = vmatprep.subr.mxu0 0.0
        %634 = vmatpush1.xpose.msra.mxu0 0.0
        %635 = vmatprep.subr.mxu0 0.0
        %636 = vmatpush1.xpose.msra.mxu0 0.0
        %637 = vmatprep.subr.mxu0 0.0
        %638 = vmatpush1.xpose.msra.mxu0 0.0
        %639 = vmatprep.subr.mxu0 0.0
        %640 = vmatpush1.xpose.msra.mxu0 0.0
        %641 = vmatprep.subr.mxu0 0.0
        %642 = vmatpush1.xpose.msra.mxu0 0.0
        %643 = vmatprep.subr.mxu0 0.0
        %644 = vmatpush1.xpose.msra.mxu0 0.0
        %645 = vmatprep.subr.mxu0 0.0
        %646 = vmatpush1.xpose.msra.mxu0 0.0
        %647 = vmatprep.subr.mxu0 0.0
        %648 = vmatpush1.xpose.msra.mxu0 0.0
        %649 = vmatprep.subr.mxu0 0.0
        %650 = vmatpush1.xpose.msra.mxu0 0.0
        %651 = vmatprep.subr.mxu0 0.0
        %652 = vmatpush1.xpose.msra.mxu0 0.0
        %653 = vmatprep.subr.mxu0 0.0
        %654 = vmatpush1.xpose.msra.mxu0 0.0
        %655 = vmatprep.subr.mxu0 0.0
        %656 = vmatpush1.xpose.msra.mxu0 0.0
        %657 = vmatprep.subr.mxu0 0.0
        %658 = vmatpush1.xpose.msra.mxu0 0.0
        %659 = vmatprep.subr.mxu0 0.0
        %660 = vmatpush1.xpose.msra.mxu0 0.0
        %661 = vmatprep.subr.mxu0 0.0
        %662 = vmatpush1.xpose.msra.mxu0 0.0
        %663 = vmatprep.subr.mxu0 0.0
        %664 = vmatpush1.xpose.msra.mxu0 0.0
        %665 = vmatprep.subr.mxu0 0.0
        %666 = vmatpush1.xpose.msra.mxu0 0.0
        %667 = vmatprep.subr.mxu0 0.0
        %668 = vmatpush1.xpose.msra.mxu0 0.0
        %669 = vmatprep.subr.mxu0 0.0
        %670 = vmatpush1.xpose.msra.mxu0 0.0
        %671 = vmatprep.subr.mxu0 0.0
        %672 = vmatpush1.xpose.msra.mxu0 0.0
        %673 = vmatprep.subr.mxu0 0.0
        %674 = vmatpush1.xpose.msra.mxu0 0.0
        %675 = vmatprep.mubr.f32.mxu0 0.0
        %676 = vmatmul.mubr.f32.gmra.mrb[0].mxu0 %v606
        %v677 = vpop.f32.mrb[0].mxu0
        %v678 = vadd.f32 0.0, %v677
        %v679 = vpop.f32.mrb[0].mxu0
        %680 = vdwg.mxu0
        %v681 = vld [vmem:[%s486] sm:$0x3]
        %vm682 = vnez %v681
        %v683 = vsel %vm682, 16843009, 0
        %v684 = vunpack.c.0.s8 %v683
        %vm685 = vcmp.ne.s32.totalorder %v684, 0
        %v686 = vsel %vm685, %v678, -inf
        %v687 = vxor.u32 %v686, 2147483648
        %v688 = vmul.f32 %v687, 1.442695
        %v689 = vpow.pop %v688
        %v690 = vadd.f32 %v689, 1.0
        %v691 = vrcp.pop %v690
        %v692 = vmul.f32 1.0, %v691
        %v693 = vmul.f32 %v686, %v692
        %v694 = vld [vmem:[#allocation3] sm:$0xff]
        %v696 = vsel %vm604, %v693, 0
        %698 = vmatprep.subr.mxu0 0.0
        %699 = vmatpush1.msra.mxu0 %v602
        %700 = vmatprep.subr.mxu0 0.0
        %701 = vmatpush1.msra.mxu0 0.0
        %702 = vmatprep.subr.mxu0 0.0
        %703 = vmatpush1.msra.mxu0 0.0
        %704 = vmatprep.subr.mxu0 0.0
        %705 = vmatpush1.msra.mxu0 0.0
        %706 = vmatprep.subr.mxu0 0.0
        %707 = vmatpush1.msra.mxu0 0.0
        %708 = vmatprep.subr.mxu0 0.0
        %709 = vmatpush1.msra.mxu0 0.0
        %710 = vmatprep.subr.mxu0 0.0
        %711 = vmatpush1.msra.mxu0 0.0
        %712 = vmatprep.subr.mxu0 0.0
        %713 = vmatpush1.msra.mxu0 0.0
        %714 = vmatprep.subr.mxu0 0.0
        %715 = vmatpush1.msra.mxu0 0.0
        %716 = vmatprep.subr.mxu0 0.0
        %717 = vmatpush1.msra.mxu0 0.0
        %718 = vmatprep.subr.mxu0 0.0
        %719 = vmatpush1.msra.mxu0 0.0
        %720 = vmatprep.subr.mxu0 0.0
        %721 = vmatpush1.msra.mxu0 0.0
        %722 = vmatprep.subr.mxu0 0.0
        %723 = vmatpush1.msra.mxu0 0.0
        %724 = vmatprep.subr.mxu0 0.0
        %725 = vmatpush1.msra.mxu0 0.0
        %726 = vmatprep.subr.mxu0 0.0
        %727 = vmatpush1.msra.mxu0 0.0
        %728 = vmatprep.subr.mxu0 0.0
        %729 = vmatpush1.msra.mxu0 0.0
        %730 = vmatprep.subr.mxu0 0.0
        %731 = vmatpush1.msra.mxu0 0.0
        %732 = vmatprep.subr.mxu0 0.0
        %733 = vmatpush1.msra.mxu0 0.0
        %734 = vmatprep.subr.mxu0 0.0
        %735 = vmatpush1.msra.mxu0 0.0
        %736 = vmatprep.subr.mxu0 0.0
        %737 = vmatpush1.msra.mxu0 0.0
        %738 = vmatprep.subr.mxu0 0.0
        %739 = vmatpush1.msra.mxu0 0.0
        %740 = vmatprep.subr.mxu0 0.0
        %741 = vmatpush1.msra.mxu0 0.0
        %742 = vmatprep.subr.mxu0 0.0
        %743 = vmatpush1.msra.mxu0 0.0
        %744 = vmatprep.subr.mxu0 0.0
        %745 = vmatpush1.msra.mxu0 0.0
        %746 = vmatprep.subr.mxu0 0.0
        %747 = vmatpush1.msra.mxu0 0.0
        %748 = vmatprep.subr.mxu0 0.0
        %749 = vmatpush1.msra.mxu0 0.0
        %750 = vmatprep.subr.mxu0 0.0
        %751 = vmatpush1.msra.mxu0 0.0
        %752 = vmatprep.subr.mxu0 0.0
        %753 = vmatpush1.msra.mxu0 0.0
        %754 = vmatprep.subr.mxu0 0.0
        %755 = vmatpush1.msra.mxu0 0.0
        %756 = vmatprep.subr.mxu0 0.0
        %757 = vmatpush1.msra.mxu0 0.0
        %758 = vmatprep.subr.mxu0 0.0
        %759 = vmatpush1.msra.mxu0 0.0
        %760 = vmatprep.subr.mxu0 0.0
        %761 = vmatpush1.msra.mxu0 0.0
        %762 = vmatprep.mubr.f32.mxu0 0.0
        %763 = vmatmul.mubr.f32.gmra.mrb[0].mxu0 %v696
        %v764 = vpop.f32.mrb[0].mxu0
        %v765 = vadd.f32 0.0, %v764
        %v766 = vpop.f32.mrb[0].mxu0
        %767 = vdwg.mxu0
        %v768 = vadd.f32 %v694, %v765
        %769 = vst.msk [vmem:[#allocation3] sm:$0xff] %vm604, %v768
        // Predicated region
        $region61: #{tpu_custom_call.1} parent=47 // pred_check
          %p770 = pneg %p502
        $region62: #{tpu_custom_call.1} parent=47 // pred_check_branch
          %772 = sbr.rel (%p770) target = $region64
        $region63: #{tpu_custom_call.1} parent=47 // pred_region
          %v773 = vld [vmem:[#allocation4] sm:$0xff]
          %v774 = vld [vmem:[#allocation3] sm:$0xff]
          %v775 = vld [vmem:[%s498] sm:$0xff]
          %v777 = vsel %vm604, %v774, 0
          %779 = vmatprep.subr.mxu0 0.0
          %780 = vmatpush1.msra.mxu0 %v775
          %781 = vmatprep.subr.mxu0 0.0
          %782 = vmatpush1.msra.mxu0 0.0
          %783 = vmatprep.subr.mxu0 0.0
          %784 = vmatpush1.msra.mxu0 0.0
          %785 = vmatprep.subr.mxu0 0.0
          %786 = vmatpush1.msra.mxu0 0.0
          %787 = vmatprep.subr.mxu0 0.0
          %788 = vmatpush1.msra.mxu0 0.0
          %789 = vmatprep.subr.mxu0 0.0
          %790 = vmatpush1.msra.mxu0 0.0
          %791 = vmatprep.subr.mxu0 0.0
          %792 = vmatpush1.msra.mxu0 0.0
          %793 = vmatprep.subr.mxu0 0.0
          %794 = vmatpush1.msra.mxu0 0.0
          %795 = vmatprep.subr.mxu0 0.0
          %796 = vmatpush1.msra.mxu0 0.0
          %797 = vmatprep.subr.mxu0 0.0
          %798 = vmatpush1.msra.mxu0 0.0
          %799 = vmatprep.subr.mxu0 0.0
          %800 = vmatpush1.msra.mxu0 0.0
          %801 = vmatprep.subr.mxu0 0.0
          %802 = vmatpush1.msra.mxu0 0.0
          %803 = vmatprep.subr.mxu0 0.0
          %804 = vmatpush1.msra.mxu0 0.0
          %805 = vmatprep.subr.mxu0 0.0
          %806 = vmatpush1.msra.mxu0 0.0
          %807 = vmatprep.subr.mxu0 0.0
          %808 = vmatpush1.msra.mxu0 0.0
          %809 = vmatprep.subr.mxu0 0.0
          %810 = vmatpush1.msra.mxu0 0.0
          %811 = vmatprep.subr.mxu0 0.0
          %812 = vmatpush1.msra.mxu0 0.0
          %813 = vmatprep.subr.mxu0 0.0
          %814 = vmatpush1.msra.mxu0 0.0
          %815 = vmatprep.subr.mxu0 0.0
          %816 = vmatpush1.msra.mxu0 0.0
          %817 = vmatprep.subr.mxu0 0.0
          %818 = vmatpush1.msra.mxu0 0.0
          %819 = vmatprep.subr.mxu0 0.0
          %820 = vmatpush1.msra.mxu0 0.0
          %821 = vmatprep.subr.mxu0 0.0
          %822 = vmatpush1.msra.mxu0 0.0
          %823 = vmatprep.subr.mxu0 0.0
          %824 = vmatpush1.msra.mxu0 0.0
          %825 = vmatprep.subr.mxu0 0.0
          %826 = vmatpush1.msra.mxu0 0.0
          %827 = vmatprep.subr.mxu0 0.0
          %828 = vmatpush1.msra.mxu0 0.0
          %829 = vmatprep.subr.mxu0 0.0
          %830 = vmatpush1.msra.mxu0 0.0
          %831 = vmatprep.subr.mxu0 0.0
          %832 = vmatpush1.msra.mxu0 0.0
          %833 = vmatprep.subr.mxu0 0.0
          %834 = vmatpush1.msra.mxu0 0.0
          %835 = vmatprep.subr.mxu0 0.0
          %836 = vmatpush1.msra.mxu0 0.0
          %837 = vmatprep.subr.mxu0 0.0
          %838 = vmatpush1.msra.mxu0 0.0
          %839 = vmatprep.subr.mxu0 0.0
          %840 = vmatpush1.msra.mxu0 0.0
          %841 = vmatprep.subr.mxu0 0.0
          %842 = vmatpush1.msra.mxu0 0.0
          %843 = vmatprep.mubr.f32.mxu0 0.0
          %844 = vmatmul.mubr.f32.gmra.mrb[0].mxu0 %v777
          %v845 = vpop.f32.mrb[0].mxu0
          %v846 = vadd.f32 0.0, %v845
          %v847 = vpop.f32.mrb[0].mxu0
          %848 = vdwg.mxu0
          %v849 = vadd.f32 %v773, %v846
          %vm850 = vcmask 261120
          %851 = vst.msk [vmem:[#allocation4] sm:$0xff] %vm850, %v849
        $region64: #{tpu_custom_call.1} parent=47 // pred_fallthru
          _
        %p852 = scmp.eq.s32.totalorder %s32, 3
        %p853 = pnand %p852, %p502
        %p854 = pneg %p853
        // Predicated region
        $region65: #{tpu_custom_call.1} parent=47 // pred_check
          _
        $region66: #{tpu_custom_call.1} parent=47 // pred_check_branch
          %856 = sbr.rel (%p853) target = $region68
        $region67: #{tpu_custom_call.1} parent=47 // pred_region
          %v857 = vld [vmem:[#allocation4] sm:$0xff]
          %vm858 = vcmask 261120
          %859 = vst.msk [vmem:[%s454] sm:$0xff] %vm858, %v857
        $region68: #{tpu_custom_call.1} parent=47 // pred_fallthru
          _
        %s860 = sand.u32 %s256, 1
        %s861 = scalar_lea.sflag [#allocation7], %s860
        %s862 = sand.u32 %s256, 1
        %s863 = smul.addr %s862, 8
        %s864 = scalar_lea.vmem [#allocation8], %s863
        // Predicated region
        $region69: #{tpu_custom_call.1} parent=47 // pred_check
          %p865 = pneg %p266
        $region70: #{tpu_custom_call.1} parent=47 // pred_check_branch
          %867 = sbr.rel (%p865) target = $region72
        $region71: #{tpu_custom_call.1} parent=47 // pred_region
          %s869 = ssub.s32 128, 128
          %870 = vsyncadd %s861, %s869
          %s871 = sadd.s32 %s31, %s30
          %s872 = smul.addr %s871, 128
          %s873 = scalar_lea.hbm %s7, %s872
          %s875 = sshll.u32 %s864, 4
          %s876 = int_to_ptr.vmem [resolvable:$true] %s875
          %878 = dma.vmem_to_hbm [thread:$0]  %s876, 128, %s873, %s861
        $region72: #{tpu_custom_call.1} parent=47 // pred_fallthru
          _
      $region48: #{tpu_custom_call.1} parent=5 // pred_fallthru
        _
      %p879 = scmp.le.s32.totalorder 2, %s19
      // Predicated region
      $region73: #{tpu_custom_call.1} parent=5 // pred_check
        %p880 = pneg %p879
      $region74: #{tpu_custom_call.1} parent=5 // pred_check_branch
        %882 = sbr.rel (%p880) target = $region76
      $region75: #{tpu_custom_call.1} parent=5 // pred_region
        %s883 = ssub.s32 %s19, 2
        // Predicated region
        $region77: #{tpu_custom_call.1} parent=75 // pred_check
          %p884 = pneg %p272
        $region78: #{tpu_custom_call.1} parent=75 // pred_check_branch
          %886 = sbr.rel (%p884) target = $region80
        $region79: #{tpu_custom_call.1} parent=75 // pred_region
          %s887 = sand.u32 %s257, 1
          %s888 = scalar_lea.sflag [#allocation7], %s887
          %s889 = sand.u32 %s257, 1
          %s890 = smul.addr %s889, 8
          %s891 = scalar_lea.vmem [#allocation8], %s890
          %892 = dma.done %s888, 128
        $region80: #{tpu_custom_call.1} parent=75 // pred_fallthru
          _
      $region76: #{tpu_custom_call.1} parent=5 // pred_fallthru
        _
    $region6: #{tpu_custom_call.1} parent=1 // loop_footer
      %s23 = sadd.s32 1, %s19
    $region7: #{tpu_custom_call.1} parent=1 // loop_footer_branch
      %18 = sbr.rel target = $region3
    $region8: #{tpu_custom_call.1} parent=1 // loop_exit
      _
    %893 = vsyncpa [#allocation6], 1
    %s894 = scalar_lea.sflag [#allocation6], 1
    %895 = vsyncpa %s894, 1
    %896 = vsyncpa [#allocation7], 1
    %s897 = scalar_lea.sflag [#allocation7], 1
    %898 = vsyncpa %s897, 1

</llo_original>
